<compile_context>
chip_gen: v7x
topology: tpu7x:2x2x1
jax: 0.10.0
libtpu: 0.0.40
codegen_flags: <defaults>
</compile_context>

<pallas_src>
import functools
import math

import jax
import jax.numpy as jnp
from jax import lax
from jax.experimental import pallas as pl
from jax.experimental.pallas import tpu as pltpu


def attention_kernel(x_ref, wqkv_ref, bqkv_ref, wo_ref, bo_ref, c_ref, s_ref,
                     o_ref, *, scale, head_size):
    hd = head_size
    S = x_ref.shape[1]
    nq = scale * hd
    g = pl.program_id(1)

    x = x_ref[0]                                                  # (S, D) bf16

    # Fused per-group Q/K/V projection: one MXU pass (bf16 operands, f32 acc).
    qkv = jnp.dot(x, wqkv_ref[...],
                  preferred_element_type=jnp.float32) + bqkv_ref[...]
    q_cols = qkv[:, :nq]                  # scale q heads, 1/sqrt(hd) pre-folded
    k_g = qkv[:, nq:nq + hd]
    v_g = qkv[:, nq + hd:nq + 2 * hd].astype(jnp.bfloat16)

    c = c_ref[...]                        # (S, hd) cos
    s = s_ref[...]                        # (S, hd) sin (rotate-half sign folded)

    def rot_half(t):                      # [a | b] -> [b | a]; sign lives in s
        if hd % 128 == 0:                 # lane-aligned: XLU roll, ~free
            return pltpu.roll(t, shift=hd // 2, axis=1)
        return jnp.concatenate([t[:, hd // 2:], t[:, :hd // 2]], axis=1)

    def rope(t):                          # rotate-half RoPE: 2 muls + 1 add
        return t * c + rot_half(t) * s

    k_g = rope(k_g).astype(jnp.bfloat16)
    # Stack the group's `scale` query heads along rows: one score matmul and
    # one PV matmul per KV group (K/V read once per group).
    # TODO(synk): for S >= the MXU tile, process q heads individually and use
    # online-softmax (flash) KV tiling instead of materializing (scale*S, S).
    q_g = jnp.concatenate(
        [rope(q_cols[:, i * hd:(i + 1) * hd]) for i in range(scale)],
        axis=0).astype(jnp.bfloat16)                           # (scale*S, hd)

    sc = lax.dot_general(q_g, k_g, (((1,), (1,)), ((), ())),
                         preferred_element_type=jnp.float32)   # (scale*S, S)
    sc = sc - jnp.max(sc, axis=-1, keepdims=True)
    p = jnp.exp(sc)                                            # f32 (EUP)
    denom = jnp.sum(p, axis=-1, keepdims=True)                 # f32 (XLU)
    og = jnp.dot(p.astype(jnp.bfloat16), v_g,
                 preferred_element_type=jnp.float32)           # (scale*S, hd)
    # Deferred softmax normalization on the (scale*S, hd) result rather than
    # the (scale*S, S) probabilities; reciprocal runs on the EUP slot.
    og = og * pl.reciprocal(denom, approx=True)

    # Re-pack heads as columns and project this group's contribution through
    # its slice of the output weight; accumulate into the resident out block.
    o_cols = jnp.concatenate([og[i * S:(i + 1) * S, :] for i in range(scale)],
                             axis=1).astype(jnp.bfloat16)      # (S, scale*hd)
    contrib = jnp.dot(o_cols, wo_ref[...],
                      preferred_element_type=jnp.float32)      # (S, D)

    @pl.when(g == 0)
    def _():
        o_ref[0] = bo_ref[...] + contrib

    @pl.when(g != 0)
    def _():
        o_ref[0] = o_ref[0] + contrib


def _vmem_limit_bytes():
    # Generation-aware budget (v5e/v6e: 128 MiB physical VMEM, v7x: 64 MiB).
    try:
        return int(pltpu.get_tpu_info().vmem_capacity_bytes * 3 // 4)
    except Exception:
        return 64 * 1024 * 1024


def attention_forward(x, params, cos, sin, qheads, kvheads):
    B, S, D = x.shape
    hd = D // qheads
    scale = qheads // kvheads
    wq, bq, wk, bk, wv, bv, wo, bo = params
    inv_dk = 1.0 / math.sqrt(hd)
    bf16 = jnp.bfloat16

    # Per-head rotate-half column permutation: [even dims | odd dims]. Applied
    # identically to q and k, so scores (dot over head dims) are unchanged;
    # v / wo are untouched, so the output is exact.
    half = jnp.concatenate([jnp.arange(0, hd, 2), jnp.arange(1, hd, 2)])

    def head_cols(first_head, n_heads):
        return ((first_head + jnp.arange(n_heads))[:, None] * hd
                + half[None, :]).reshape(-1)

    # Fused, group-major QKV weight: per KV group the columns are
    # [scale q heads (RoPE-permuted, 1/sqrt(hd) folded) | k head (permuted) |
    #  v head | zero pad to a 128-lane multiple] so column tiling is lane-clean.
    gw = (scale + 2) * hd
    gwp = ((gw + 127) // 128) * 128
    w_groups, b_groups = [], []
    for g in range(kvheads):
        qcols = head_cols(g * scale, scale)
        kcols = head_cols(g, 1)
        vcols = jnp.arange(g * hd, (g + 1) * hd)
        wg = jnp.concatenate(
            [wq[:, qcols] * inv_dk, wk[:, kcols], wv[:, vcols]], axis=1)
        bg = jnp.concatenate(
            [bq[:, qcols] * inv_dk, bk[:, kcols], bv[:, vcols]], axis=1)
        if gwp != gw:
            wg = jnp.pad(wg, ((0, 0), (0, gwp - gw)))
            bg = jnp.pad(bg, ((0, 0), (0, gwp - gw)))
        w_groups.append(wg)
        b_groups.append(bg)
    w_qkv = jnp.concatenate(w_groups, axis=1).astype(bf16)   # (D, kvheads*gwp)
    b_qkv = jnp.concatenate(b_groups, axis=1)                # (1, kvheads*gwp)

    # Single (S, hd) trig pair; rotate-half sign folded into sin.
    c = jnp.concatenate([cos[:S], cos[:S]], axis=-1)
    s = jnp.concatenate([-sin[:S], sin[:S]], axis=-1)

    kernel = functools.partial(attention_kernel, scale=scale, head_size=hd)

    return pl.pallas_call(
        kernel,
        out_shape=jax.ShapeDtypeStruct((B, S, D), jnp.float32),
        grid=(B, kvheads),
        in_specs=[
            pl.BlockSpec((1, S, D), lambda b, g: (b, 0, 0)),       # x (bf16)
            pl.BlockSpec((D, gwp), lambda b, g: (0, g)),           # fused QKV W
            pl.BlockSpec((1, gwp), lambda b, g: (0, g)),           # fused QKV b
            pl.BlockSpec((scale * hd, D), lambda b, g: (g, 0)),    # wo group rows
            pl.BlockSpec((1, D), lambda b, g: (0, 0)),             # bo
            pl.BlockSpec((S, hd), lambda b, g: (0, 0)),            # cos
            pl.BlockSpec((S, hd), lambda b, g: (0, 0)),            # sin
        ],
        out_specs=pl.BlockSpec((1, S, D), lambda b, g: (b, 0, 0)),
        compiler_params=pltpu.CompilerParams(
            dimension_semantics=("parallel", "arbitrary"),
            vmem_limit_bytes=_vmem_limit_bytes()),
    )(x.astype(bf16), w_qkv, b_qkv, wo.astype(bf16), bo, c, s)


def reference_forward(x, params, cos, sin, qheads, kvheads):
    """Pure-JAX (f32) mirror of the PyTorch forward, for verification."""
    B, S, D = x.shape
    hd = D // qheads
    scale = qheads // kvheads
    wq, bq, wk, bk, wv, bv, wo, bo = params

    q = (x @ wq + bq).reshape(B, S, qheads, hd)
    k = (x @ wk + bk).reshape(B, S, kvheads, hd)
    v = (x @ wv + bv).reshape(B, S, kvheads, hd)

    def rope(t):
        tr = t.reshape(*t.shape[:-1], hd // 2, 2)
        a, b = tr[..., 0], tr[..., 1]
        c = cos[:S][None, :, None, :]
        s = sin[:S][None, :, None, :]
        return jnp.stack([a * c - b * s, a * s + b * c], axis=-1).reshape(t.shape)

    q, k = rope(q), rope(k)
    q = q.transpose(0, 2, 1, 3)
    k = jnp.repeat(k.transpose(0, 2, 1, 3), scale, axis=1)
    v = jnp.repeat(v.transpose(0, 2, 1, 3), scale, axis=1)

    sc = (q @ k.transpose(0, 1, 3, 2)) / jnp.sqrt(jnp.float32(hd))
    sc = jax.nn.softmax(sc, axis=-1)
    o = (sc @ v).transpose(0, 2, 1, 3).reshape(B, S, qheads * hd)
    return o @ wo + bo


if __name__ == "__main__":
    B, S, D = 2, 8, 32
    qheads, kvheads = 4, 2
    hd = D // qheads
    max_seq = 16

    key = jax.random.PRNGKey(0)
    ks = jax.random.split(key, 9)

    # Round-trip through bf16 so the kernel (bf16 MXU operands) and the f32
    # reference see identical weight/activation values; remaining diff is the
    # in-kernel activation casts + approx reciprocal.
    def _r(w):
        return w.astype(jnp.bfloat16).astype(jnp.float32)

    x = _r(jax.random.normal(ks[0], (B, S, D), jnp.float32))
    wq = _r(jax.random.normal(ks[1], (D, qheads * hd), jnp.float32) * 0.1)
    bq = jax.random.normal(ks[2], (1, qheads * hd), jnp.float32) * 0.1
    wk = _r(jax.random.normal(ks[3], (D, kvheads * hd), jnp.float32) * 0.1)
    bk = jax.random.normal(ks[4], (1, kvheads * hd), jnp.float32) * 0.1
    wv = _r(jax.random.normal(ks[5], (D, kvheads * hd), jnp.float32) * 0.1)
    bv = jax.random.normal(ks[6], (1, kvheads * hd), jnp.float32) * 0.1
    wo = _r(jax.random.normal(ks[7], (qheads * hd, D), jnp.float32) * 0.1)
    bo = jax.random.normal(ks[8], (1, D), jnp.float32) * 0.1
    params = (wq, bq, wk, bk, wv, bv, wo, bo)

    # freqs_cis (complex exponentials), kept as cos/sin pairs.
    inv_freq = 1.0 / (10000.0 ** (jnp.arange(0, hd, 2, dtype=jnp.float32) / hd))
    t = jnp.arange(max_seq, dtype=jnp.float32)
    ang = jnp.outer(t, inv_freq)                    # (max_seq, hd//2)
    cos, sin = jnp.cos(ang), jnp.sin(ang)

    out = attention_forward(x, params, cos, sin, qheads, kvheads)
    out = jax.block_until_ready(out)

    ref = reference_forward(x, params, cos, sin, qheads, kvheads)
    assert out.shape == (B, S, D)
    # Tolerance accounts for bf16 MXU operands and the approx EUP reciprocal.
    assert jnp.allclose(out, ref, atol=5e-2, rtol=5e-2), float(
        jnp.max(jnp.abs(out - ref)))
    print("KERNEL_OK")
</pallas_src>

<mosaic_0001>
module attributes {stable_mosaic.version = 11 : i64} {
  func.func @attention_kernel(%arg0: i32, %arg1: i32, %arg2: memref<1x8x32xbf16, #tpu.memory_space<vmem>>, %arg3: memref<32x128xbf16, #tpu.memory_space<vmem>>, %arg4: memref<1x128xf32, #tpu.memory_space<vmem>>, %arg5: memref<16x32xbf16, #tpu.memory_space<vmem>>, %arg6: memref<1x32xf32, #tpu.memory_space<vmem>>, %arg7: memref<8x8xf32, #tpu.memory_space<vmem>>, %arg8: memref<8x8xf32, #tpu.memory_space<vmem>>, %arg9: memref<1x8x32xf32, #tpu.memory_space<vmem>>) attributes {dimension_semantics = [#tpu.dimension_semantics<parallel>, #tpu.dimension_semantics<arbitrary>], iteration_bounds = array<i64: 2, 2>, scalar_prefetch = 0 : i64, scratch_operands = 0 : i64, tpu.core_type = #tpu.core_type<tc>, window_params = [{transform_indices = @transform_0, window_bounds = array<i64: 1, 8, 32>}, {transform_indices = @transform_1, window_bounds = array<i64: 32, 128>}, {transform_indices = @transform_2, window_bounds = array<i64: 1, 128>}, {transform_indices = @transform_3, window_bounds = array<i64: 16, 32>}, {pipeline_mode = #tpu.pipeline_mode<synchronous>, transform_indices = @transform_4, window_bounds = array<i64: 1, 32>}, {pipeline_mode = #tpu.pipeline_mode<synchronous>, transform_indices = @transform_5, window_bounds = array<i64: 8, 8>}, {pipeline_mode = #tpu.pipeline_mode<synchronous>, transform_indices = @transform_6, window_bounds = array<i64: 8, 8>}, {transform_indices = @transform_7, window_bounds = array<i64: 1, 8, 32>}]} {
    %c0 = arith.constant 0 : index
    %c0_0 = arith.constant 0 : index
    %c0_1 = arith.constant 0 : index
    %0 = vector.load %arg2[%c0, %c0_0, %c0_1] : memref<1x8x32xbf16, #tpu.memory_space<vmem>>, vector<1x8x32xbf16>
    %1 = vector.shape_cast %0 : vector<1x8x32xbf16> to vector<8x32xbf16>
    %c0_2 = arith.constant 0 : index
    %c0_3 = arith.constant 0 : index
    %2 = vector.load %arg3[%c0_2, %c0_3] : memref<32x128xbf16, #tpu.memory_space<vmem>>, vector<32x128xbf16>
    %cst = arith.constant dense<0.000000e+00> : vector<8x128xf32>
    %3 = tpu.matmul %1, %2, %cst {dimension_numbers = #tpu.dot_dimension_numbers<[1], [0], [0], [1], [0, 0, 1, 1], [], []>} : vector<8x32xbf16>, vector<32x128xbf16>, vector<8x128xf32> -> vector<8x128xf32>
    %c0_4 = arith.constant 0 : index
    %c0_5 = arith.constant 0 : index
    %4 = vector.load %arg4[%c0_4, %c0_5] : memref<1x128xf32, #tpu.memory_space<vmem>>, vector<1x128xf32>
    %5 = vector.broadcast %4 : vector<1x128xf32> to vector<8x128xf32>
    %6 = arith.addf %3, %5 : vector<8x128xf32>
    %7 = vector.extract_strided_slice %6 {offsets = [0, 0], sizes = [8, 16], strides = [1, 1]} : vector<8x128xf32> to vector<8x16xf32>
    %8 = vector.extract_strided_slice %6 {offsets = [0, 16], sizes = [8, 8], strides = [1, 1]} : vector<8x128xf32> to vector<8x8xf32>
    %9 = vector.extract_strided_slice %6 {offsets = [0, 24], sizes = [8, 8], strides = [1, 1]} : vector<8x128xf32> to vector<8x8xf32>
    %10 = arith.truncf %9 : vector<8x8xf32> to vector<8x8xbf16>
    %c0_6 = arith.constant 0 : index
    %c0_7 = arith.constant 0 : index
    %11 = vector.load %arg7[%c0_6, %c0_7] : memref<8x8xf32, #tpu.memory_space<vmem>>, vector<8x8xf32>
    %c0_8 = arith.constant 0 : index
    %c0_9 = arith.constant 0 : index
    %12 = vector.load %arg8[%c0_8, %c0_9] : memref<8x8xf32, #tpu.memory_space<vmem>>, vector<8x8xf32>
    %13 = arith.mulf %8, %11 : vector<8x8xf32>
    %14 = vector.extract_strided_slice %8 {offsets = [0, 4], sizes = [8, 4], strides = [1, 1]} : vector<8x8xf32> to vector<8x4xf32>
    %15 = vector.extract_strided_slice %8 {offsets = [0, 0], sizes = [8, 4], strides = [1, 1]} : vector<8x8xf32> to vector<8x4xf32>
    %16 = tpu.concatenate %14, %15 in 1 : vector<8x4xf32>, vector<8x4xf32> -> vector<8x8xf32>
    %17 = arith.mulf %16, %12 : vector<8x8xf32>
    %18 = arith.addf %13, %17 : vector<8x8xf32>
    %19 = arith.truncf %18 : vector<8x8xf32> to vector<8x8xbf16>
    %20 = vector.extract_strided_slice %7 {offsets = [0, 0], sizes = [8, 8], strides = [1, 1]} : vector<8x16xf32> to vector<8x8xf32>
    %21 = arith.mulf %20, %11 : vector<8x8xf32>
    %22 = vector.extract_strided_slice %20 {offsets = [0, 4], sizes = [8, 4], strides = [1, 1]} : vector<8x8xf32> to vector<8x4xf32>
    %23 = vector.extract_strided_slice %20 {offsets = [0, 0], sizes = [8, 4], strides = [1, 1]} : vector<8x8xf32> to vector<8x4xf32>
    %24 = tpu.concatenate %22, %23 in 1 : vector<8x4xf32>, vector<8x4xf32> -> vector<8x8xf32>
    %25 = arith.mulf %24, %12 : vector<8x8xf32>
    %26 = arith.addf %21, %25 : vector<8x8xf32>
    %27 = vector.extract_strided_slice %7 {offsets = [0, 8], sizes = [8, 8], strides = [1, 1]} : vector<8x16xf32> to vector<8x8xf32>
    %28 = arith.mulf %27, %11 : vector<8x8xf32>
    %29 = vector.extract_strided_slice %27 {offsets = [0, 4], sizes = [8, 4], strides = [1, 1]} : vector<8x8xf32> to vector<8x4xf32>
    %30 = vector.extract_strided_slice %27 {offsets = [0, 0], sizes = [8, 4], strides = [1, 1]} : vector<8x8xf32> to vector<8x4xf32>
    %31 = tpu.concatenate %29, %30 in 1 : vector<8x4xf32>, vector<8x4xf32> -> vector<8x8xf32>
    %32 = arith.mulf %31, %12 : vector<8x8xf32>
    %33 = arith.addf %28, %32 : vector<8x8xf32>
    %34 = tpu.concatenate %26, %33 in 0 : vector<8x8xf32>, vector<8x8xf32> -> vector<16x8xf32>
    %35 = arith.truncf %34 : vector<16x8xf32> to vector<16x8xbf16>
    %cst_10 = arith.constant dense<0.000000e+00> : vector<16x8xf32>
    %36 = tpu.matmul %35, %19, %cst_10 {dimension_numbers = #tpu.dot_dimension_numbers<[1], [1], [0], [0], [0, 0, 1, 0], [], []>} : vector<16x8xbf16>, vector<8x8xbf16>, vector<16x8xf32> -> vector<16x8xf32>
    %cst_11 = arith.constant dense<0xFF800000> : vector<16xf32>
    %37 = vector.multi_reduction <maximumf>, %36, %cst_11 [1] : vector<16x8xf32> to vector<16xf32>
    %38 = vector.shape_cast %37 : vector<16xf32> to vector<16x1xf32>
    %39 = vector.broadcast %38 : vector<16x1xf32> to vector<16x8xf32>
    %40 = arith.subf %36, %39 : vector<16x8xf32>
    %41 = math.exp %40 : vector<16x8xf32>
    %cst_12 = arith.constant dense<0.000000e+00> : vector<16xf32>
    %42 = vector.multi_reduction <add>, %41, %cst_12 [1] : vector<16x8xf32> to vector<16xf32>
    %43 = vector.shape_cast %42 : vector<16xf32> to vector<16x1xf32>
    %44 = arith.truncf %41 : vector<16x8xf32> to vector<16x8xbf16>
    %cst_13 = arith.constant dense<0.000000e+00> : vector<16x8xf32>
    %45 = tpu.matmul %44, %10, %cst_13 {dimension_numbers = #tpu.dot_dimension_numbers<[1], [0], [0], [1], [0, 0, 1, 1], [], []>} : vector<16x8xbf16>, vector<8x8xbf16>, vector<16x8xf32> -> vector<16x8xf32>
    %46 = tpu.reciprocal %43 {approx = true} : vector<16x1xf32> -> vector<16x1xf32>
    %47 = vector.broadcast %46 : vector<16x1xf32> to vector<16x8xf32>
    %48 = arith.mulf %45, %47 : vector<16x8xf32>
    %49 = vector.extract_strided_slice %48 {offsets = [0, 0], sizes = [8, 8], strides = [1, 1]} : vector<16x8xf32> to vector<8x8xf32>
    %50 = vector.extract_strided_slice %48 {offsets = [8, 0], sizes = [8, 8], strides = [1, 1]} : vector<16x8xf32> to vector<8x8xf32>
    %51 = tpu.concatenate %49, %50 in 1 : vector<8x8xf32>, vector<8x8xf32> -> vector<8x16xf32>
    %52 = arith.truncf %51 : vector<8x16xf32> to vector<8x16xbf16>
    %c0_14 = arith.constant 0 : index
    %c0_15 = arith.constant 0 : index
    %53 = vector.load %arg5[%c0_14, %c0_15] : memref<16x32xbf16, #tpu.memory_space<vmem>>, vector<16x32xbf16>
    %cst_16 = arith.constant dense<0.000000e+00> : vector<8x32xf32>
    %54 = tpu.matmul %52, %53, %cst_16 {dimension_numbers = #tpu.dot_dimension_numbers<[1], [0], [0], [1], [0, 0, 1, 1], [], []>} : vector<8x16xbf16>, vector<16x32xbf16>, vector<8x32xf32> -> vector<8x32xf32>
    %c0_i32 = arith.constant 0 : i32
    %55 = arith.cmpi eq, %arg1, %c0_i32 : i32
    %56 = arith.extui %55 : i1 to i32
    %c0_i32_17 = arith.constant 0 : i32
    %57 = arith.cmpi ne, %56, %c0_i32_17 : i32
    scf.if %57 {
      %c0_20 = arith.constant 0 : index
      %c0_21 = arith.constant 0 : index
      %61 = vector.load %arg6[%c0_20, %c0_21] : memref<1x32xf32, #tpu.memory_space<vmem>>, vector<1x32xf32>
      %62 = vector.broadcast %61 : vector<1x32xf32> to vector<8x32xf32>
      %63 = arith.addf %62, %54 : vector<8x32xf32>
      %c0_22 = arith.constant 0 : index
      %c0_23 = arith.constant 0 : index
      %c0_24 = arith.constant 0 : index
      %64 = vector.load %arg9[%c0_22, %c0_23, %c0_24] : memref<1x8x32xf32, #tpu.memory_space<vmem>>, vector<1x8x32xf32>
      %65 = vector.shape_cast %64 : vector<1x8x32xf32> to vector<8x32xf32>
      %66 = vector.shape_cast %63 : vector<8x32xf32> to vector<1x8x32xf32>
      tpu.vector_store %arg9[%c0_22, %c0_23, %c0_24], %66 {strides = array<i32>} : memref<1x8x32xf32, #tpu.memory_space<vmem>>, vector<1x8x32xf32>,
    } else {
    }
    %c0_i32_18 = arith.constant 0 : i32
    %58 = arith.cmpi ne, %arg1, %c0_i32_18 : i32
    %59 = arith.extui %58 : i1 to i32
    %c0_i32_19 = arith.constant 0 : i32
    %60 = arith.cmpi ne, %59, %c0_i32_19 : i32
    scf.if %60 {
      %c0_20 = arith.constant 0 : index
      %c0_21 = arith.constant 0 : index
      %c0_22 = arith.constant 0 : index
      %61 = vector.load %arg9[%c0_20, %c0_21, %c0_22] : memref<1x8x32xf32, #tpu.memory_space<vmem>>, vector<1x8x32xf32>
      %62 = vector.shape_cast %61 : vector<1x8x32xf32> to vector<8x32xf32>
      %63 = arith.addf %62, %54 : vector<8x32xf32>
      %c0_23 = arith.constant 0 : index
      %c0_24 = arith.constant 0 : index
      %c0_25 = arith.constant 0 : index
      %64 = vector.load %arg9[%c0_23, %c0_24, %c0_25] : memref<1x8x32xf32, #tpu.memory_space<vmem>>, vector<1x8x32xf32>
      %65 = vector.shape_cast %64 : vector<1x8x32xf32> to vector<8x32xf32>
      %66 = vector.shape_cast %63 : vector<8x32xf32> to vector<1x8x32xf32>
      tpu.vector_store %arg9[%c0_23, %c0_24, %c0_25], %66 {strides = array<i32>} : memref<1x8x32xf32, #tpu.memory_space<vmem>>, vector<1x8x32xf32>,
    } else {
    }
    return
  }
  func.func @transform_0(%arg0: i32, %arg1: i32) -> (i32, i32, i32) {
    %c0_i32 = arith.constant 0 : i32
    %c0_i32_0 = arith.constant 0 : i32
    %c0_i32_1 = arith.constant 0 : i32
    return %arg0, %c0_i32, %c0_i32_0 : i32, i32, i32
  }
  func.func @transform_1(%arg0: i32, %arg1: i32) -> (i32, i32) {
    %c0_i32 = arith.constant 0 : i32
    %c0_i32_0 = arith.constant 0 : i32
    return %c0_i32, %arg1 : i32, i32
  }
  func.func @transform_2(%arg0: i32, %arg1: i32) -> (i32, i32) {
    %c0_i32 = arith.constant 0 : i32
    %c0_i32_0 = arith.constant 0 : i32
    return %c0_i32, %arg1 : i32, i32
  }
  func.func @transform_3(%arg0: i32, %arg1: i32) -> (i32, i32) {
    %c0_i32 = arith.constant 0 : i32
    %c0_i32_0 = arith.constant 0 : i32
    return %arg1, %c0_i32 : i32, i32
  }
  func.func @transform_4(%arg0: i32, %arg1: i32) -> (i32, i32) {
    %c0_i32 = arith.constant 0 : i32
    %c0_i32_0 = arith.constant 0 : i32
    %c0_i32_1 = arith.constant 0 : i32
    return %c0_i32, %c0_i32_0 : i32, i32
  }
  func.func @transform_5(%arg0: i32, %arg1: i32) -> (i32, i32) {
    %c0_i32 = arith.constant 0 : i32
    %c0_i32_0 = arith.constant 0 : i32
    %c0_i32_1 = arith.constant 0 : i32
    return %c0_i32, %c0_i32_0 : i32, i32
  }
  func.func @transform_6(%arg0: i32, %arg1: i32) -> (i32, i32) {
    %c0_i32 = arith.constant 0 : i32
    %c0_i32_0 = arith.constant 0 : i32
    %c0_i32_1 = arith.constant 0 : i32
    return %c0_i32, %c0_i32_0 : i32, i32
  }
  func.func @transform_7(%arg0: i32, %arg1: i32) -> (i32, i32, i32) {
    %c0_i32 = arith.constant 0 : i32
    %c0_i32_0 = arith.constant 0 : i32
    %c0_i32_1 = arith.constant 0 : i32
    return %arg0, %c0_i32, %c0_i32_0 : i32, i32, i32
  }
}

</mosaic_0001>

<llo_original>
// kernel: tpu_custom_call.1
$region0: #{tpu_custom_call.1}
  #allocation0 [shape = 'u32[]', space=smem, size = 0x4, offset = 0x4, fixed_abs, tag = 'smem constant byte address 0x4 - core index']
  #allocation1 [shape = 'u32[144,128]{1,0:T(1,128)}', space=vmem, size = 0x12000, scoped, tag = 'internal scratch']
  %s0 = inlined_call_operand.hbm [shape: bf16[2,8,32], index: 0, kind: input, shape index: {}]
  %s1 = inlined_call_operand.hbm [shape: bf16[32,256], index: 1, kind: input, shape index: {}]
  %s2 = inlined_call_operand.hbm [shape: f32[1,256], index: 2, kind: input, shape index: {}]
  %s3 = inlined_call_operand.hbm [shape: bf16[32,32], index: 3, kind: input, shape index: {}]
  %s4 = inlined_call_operand.hbm [shape: f32[1,32], index: 4, kind: input, shape index: {}]
  %s5 = inlined_call_operand.hbm [shape: f32[8,8], index: 5, kind: input, shape index: {}]
  %s6 = inlined_call_operand.hbm [shape: f32[8,8], index: 6, kind: input, shape index: {}]
  %s7 = inlined_call_operand.hbm [shape: f32[2,8,32], index: 7, kind: output, shape index: {}]
  %s8 = sld [smem:[#allocation0]]
  $region97: #{tpu_custom_call.1} parent=0
    _
  %s10 = ssub.s32 1, %s8
  %s11 = scalar_select 0, %s10, %s8
  $region1: #{tpu_custom_call.1} parent=0
    #allocation2 [shape = 'u8[4096]{0}', space=vmem, size = 0x1000, scoped, tag = 'input window, operand 0']
    #allocation3 [shape = 's32[2]{0}', space=sflag, size = 0x8, scoped, tag = 'scoped memory for tpu_custom_call.1']
    #allocation4 [shape = 's32[2]{0}', space=sflag, size = 0x8, scoped, tag = 'scoped memory for tpu_custom_call.1']
    #allocation5 [shape = 'u8[16384]{0}', space=vmem, size = 0x4000, scoped, tag = 'input window, operand 1']
    #allocation6 [shape = 's32[2]{0}', space=sflag, size = 0x8, scoped, tag = 'scoped memory for tpu_custom_call.1']
    #allocation7 [shape = 'u8[1024]{0}', space=vmem, size = 0x400, scoped, tag = 'input window, operand 2']
    #allocation8 [shape = 'u8[8192]{0}', space=vmem, size = 0x2000, scoped, tag = 'input window, operand 3']
    #allocation9 [shape = 's32[2]{0}', space=sflag, size = 0x8, scoped, tag = 'scoped memory for tpu_custom_call.1']
    #allocation10 [shape = 'u8[512]{0}', space=vmem, size = 0x400, scoped, tag = 'input window, operand 4, single buffered']
    #allocation11 [shape = 'u8[4096]{0}', space=vmem, size = 0x1000, scoped, tag = 'input window, operand 5, single buffered']
    #allocation12 [shape = 's32[1]{0}', space=sflag, size = 0x4, scoped, tag = 'scoped memory for tpu_custom_call.1']
    #allocation13 [shape = 'u8[4096]{0}', space=vmem, size = 0x1000, scoped, tag = 'input window, operand 6, single buffered']
    #allocation14 [shape = 'u8[8192]{0}', space=vmem, size = 0x2000, scoped, tag = 'output window, operand 0']
    %12 = vsyncpa [#allocation3], 0
    %s13 = scalar_lea.sflag [#allocation3], 1
    %14 = vsyncpa %s13, 0
    %15 = vsyncpa [#allocation6], 0
    %s16 = scalar_lea.sflag [#allocation6], 1
    %17 = vsyncpa %s16, 0
    %18 = vsyncpa [#allocation9], 0
    %s19 = scalar_lea.sflag [#allocation9], 1
    %20 = vsyncpa %s19, 0
    %21 = vsyncpa [#allocation12], 0
    %22 = vsyncpa [#allocation4], 0
    %s23 = scalar_lea.sflag [#allocation4], 1
    %24 = vsyncpa %s23, 0
    loop: start=0, step=1, limit=6
    $region2: #{tpu_custom_call.1} parent=1 // loop_pre_header
      _
    $region3: #{tpu_custom_call.1} parent=1 // loop_header
      %s26 = sphi 0, %s30
      %p27 = scmp.ge.s32.totalorder %s26, 6
      %s33 = sphi 0, %s45
      %s34 = sphi 0, %s41
      %s35 = sphi 0, %s33
      %s36 = sphi 0, %s34
      %s37 = sphi 0, %s35
      %s38 = sphi 0, %s36
      %s48 = sphi 0, %s50
      %s51 = sphi 0, %s48
      %s52 = sphi 0, %s51
      %s68 = sphi 0, %s52
      %s74 = sphi 0, %s76
      %s77 = sphi 0, %s74
      %s78 = sphi 0, %s77
      %s94 = sphi 0, %s78
      %s100 = sphi 0, %s102
      %s103 = sphi 0, %s100
      %s104 = sphi 0, %s103
      %s120 = sphi 0, %s104
      %s126 = sphi 0, %s128
      %s129 = sphi 0, %s126
      %s130 = sphi 0, %s129
      %s146 = sphi 0, %s130
      %s150 = sphi 0, %s150
      %s152 = sphi 0, %s150
      %s153 = sphi 0, %s152
      %s167 = sphi 0, %s153
      %s171 = sphi 0, %s171
      %s173 = sphi 0, %s171
      %s174 = sphi 0, %s173
      %s188 = sphi 0, %s174
      %s192 = sphi 0, %s192
      %s194 = sphi 0, %s192
      %s195 = sphi 0, %s194
      %s209 = sphi 0, %s195
      %s215 = sphi 0, %s217
      %s218 = sphi 0, %s215
      %s219 = sphi 0, %s218
      %s235 = sphi 0, %s219
    $region4: #{tpu_custom_call.1} parent=1 // loop_header_branch
      %29 = sbr.rel (%p27) target = $region8
    $region5: #{tpu_custom_call.1} parent=1 // loop_body
      %s31 = ssub.s32 %s26, 1
      %s32 = ssub.s32 %s26, 2
      %s39 = sadd.s32 1, %s34
      %p40 = scmp.ge.s32.totalorder %s39, 2
      %s41 = scalar_select %p40, 0, %s39
      %s42 = sadd.s32 1, %s33
      %s43 = scalar_select %p40, %s42, %s33
      %p44 = scmp.ge.s32.totalorder %s43, 2
      %s45 = scalar_select %p44, 0, %s43
      %s46 = ssub.s32 %s33, %s45
      %p47 = scmp.eq.s32.totalorder %s46, 0
      %s49 = sadd.s32 %s48, 1
      %s50 = scalar_select %p47, %s48, %s49
      %p53 = pneg %p47
      %p54 = scmp.eq.s32.totalorder %s26, 3
      %p55 = por %p53, %p54
      %p56 = scmp.ne.s32.totalorder %s48, %s51
      %p57 = scmp.eq.s32.totalorder %s26, 0
      %p58 = por %p56, %p57
      %p59 = scmp.ne.s32.totalorder %s48, %s51
      %p60 = scmp.eq.s32.totalorder %s31, 3
      %p61 = por %p59, %p60
      %p62 = scmp.ne.s32.totalorder %s51, %s52
      %p63 = scmp.eq.s32.totalorder %s31, 0
      %p64 = por %p62, %p63
      %p65 = scmp.ne.s32.totalorder %s51, %s52
      %p66 = scmp.eq.s32.totalorder %s32, 3
      %p67 = por %p65, %p66
      %p69 = scmp.ne.s32.totalorder %s52, %s68
      %p70 = scmp.eq.s32.totalorder %s32, 0
      %p71 = por %p69, %p70
      %s72 = ssub.s32 %s34, %s41
      %p73 = scmp.eq.s32.totalorder %s72, 0
      %s75 = sadd.s32 %s74, 1
      %s76 = scalar_select %p73, %s74, %s75
      %p79 = pneg %p73
      %p80 = scmp.eq.s32.totalorder %s26, 3
      %p81 = por %p79, %p80
      %p82 = scmp.ne.s32.totalorder %s74, %s77
      %p83 = scmp.eq.s32.totalorder %s26, 0
      %p84 = por %p82, %p83
      %p85 = scmp.ne.s32.totalorder %s74, %s77
      %p86 = scmp.eq.s32.totalorder %s31, 3
      %p87 = por %p85, %p86
      %p88 = scmp.ne.s32.totalorder %s77, %s78
      %p89 = scmp.eq.s32.totalorder %s31, 0
      %p90 = por %p88, %p89
      %p91 = scmp.ne.s32.totalorder %s77, %s78
      %p92 = scmp.eq.s32.totalorder %s32, 3
      %p93 = por %p91, %p92
      %p95 = scmp.ne.s32.totalorder %s78, %s94
      %p96 = scmp.eq.s32.totalorder %s32, 0
      %p97 = por %p95, %p96
      %s98 = ssub.s32 %s34, %s41
      %p99 = scmp.eq.s32.totalorder %s98, 0
      %s101 = sadd.s32 %s100, 1
      %s102 = scalar_select %p99, %s100, %s101
      %p105 = pneg %p99
      %p106 = scmp.eq.s32.totalorder %s26, 3
      %p107 = por %p105, %p106
      %p108 = scmp.ne.s32.totalorder %s100, %s103
      %p109 = scmp.eq.s32.totalorder %s26, 0
      %p110 = por %p108, %p109
      %p111 = scmp.ne.s32.totalorder %s100, %s103
      %p112 = scmp.eq.s32.totalorder %s31, 3
      %p113 = por %p111, %p112
      %p114 = scmp.ne.s32.totalorder %s103, %s104
      %p115 = scmp.eq.s32.totalorder %s31, 0
      %p116 = por %p114, %p115
      %p117 = scmp.ne.s32.totalorder %s103, %s104
      %p118 = scmp.eq.s32.totalorder %s32, 3
      %p119 = por %p117, %p118
      %p121 = scmp.ne.s32.totalorder %s104, %s120
      %p122 = scmp.eq.s32.totalorder %s32, 0
      %p123 = por %p121, %p122
      %s124 = ssub.s32 %s34, %s41
      %p125 = scmp.eq.s32.totalorder %s124, 0
      %s127 = sadd.s32 %s126, 1
      %s128 = scalar_select %p125, %s126, %s127
      %p131 = pneg %p125
      %p132 = scmp.eq.s32.totalorder %s26, 3
      %p133 = por %p131, %p132
      %p134 = scmp.ne.s32.totalorder %s126, %s129
      %p135 = scmp.eq.s32.totalorder %s26, 0
      %p136 = por %p134, %p135
      %p137 = scmp.ne.s32.totalorder %s126, %s129
      %p138 = scmp.eq.s32.totalorder %s31, 3
      %p139 = por %p137, %p138
      %p140 = scmp.ne.s32.totalorder %s129, %s130
      %p141 = scmp.eq.s32.totalorder %s31, 0
      %p142 = por %p140, %p141
      %p143 = scmp.ne.s32.totalorder %s129, %s130
      %p144 = scmp.eq.s32.totalorder %s32, 3
      %p145 = por %p143, %p144
      %p147 = scmp.ne.s32.totalorder %s130, %s146
      %p148 = scmp.eq.s32.totalorder %s32, 0
      %p149 = por %p147, %p148
      %s151 = sadd.s32 %s150, 1
      %p154 = scmp.eq.s32.totalorder %s26, 3
      %p155 = scmp.ne.s32.totalorder %s150, %s152
      %p156 = scmp.eq.s32.totalorder %s26, 0
      %p157 = por %p155, %p156
      %p158 = scmp.ne.s32.totalorder %s150, %s152
      %p159 = scmp.eq.s32.totalorder %s31, 3
      %p160 = por %p158, %p159
      %p161 = scmp.ne.s32.totalorder %s152, %s153
      %p162 = scmp.eq.s32.totalorder %s31, 0
      %p163 = por %p161, %p162
      %p164 = scmp.ne.s32.totalorder %s152, %s153
      %p165 = scmp.eq.s32.totalorder %s32, 3
      %p166 = por %p164, %p165
      %p168 = scmp.ne.s32.totalorder %s153, %s167
      %p169 = scmp.eq.s32.totalorder %s32, 0
      %p170 = por %p168, %p169
      %s172 = sadd.s32 %s171, 1
      %p175 = scmp.eq.s32.totalorder %s26, 3
      %p176 = scmp.ne.s32.totalorder %s171, %s173
      %p177 = scmp.eq.s32.totalorder %s26, 0
      %p178 = por %p176, %p177
      %p179 = scmp.ne.s32.totalorder %s171, %s173
      %p180 = scmp.eq.s32.totalorder %s31, 3
      %p181 = por %p179, %p180
      %p182 = scmp.ne.s32.totalorder %s173, %s174
      %p183 = scmp.eq.s32.totalorder %s31, 0
      %p184 = por %p182, %p183
      %p185 = scmp.ne.s32.totalorder %s173, %s174
      %p186 = scmp.eq.s32.totalorder %s32, 3
      %p187 = por %p185, %p186
      %p189 = scmp.ne.s32.totalorder %s174, %s188
      %p190 = scmp.eq.s32.totalorder %s32, 0
      %p191 = por %p189, %p190
      %s193 = sadd.s32 %s192, 1
      %p196 = scmp.eq.s32.totalorder %s26, 3
      %p197 = scmp.ne.s32.totalorder %s192, %s194
      %p198 = scmp.eq.s32.totalorder %s26, 0
      %p199 = por %p197, %p198
      %p200 = scmp.ne.s32.totalorder %s192, %s194
      %p201 = scmp.eq.s32.totalorder %s31, 3
      %p202 = por %p200, %p201
      %p203 = scmp.ne.s32.totalorder %s194, %s195
      %p204 = scmp.eq.s32.totalorder %s31, 0
      %p205 = por %p203, %p204
      %p206 = scmp.ne.s32.totalorder %s194, %s195
      %p207 = scmp.eq.s32.totalorder %s32, 3
      %p208 = por %p206, %p207
      %p210 = scmp.ne.s32.totalorder %s195, %s209
      %p211 = scmp.eq.s32.totalorder %s32, 0
      %p212 = por %p210, %p211
      %s213 = ssub.s32 %s33, %s45
      %p214 = scmp.eq.s32.totalorder %s213, 0
      %s216 = sadd.s32 %s215, 1
      %s217 = scalar_select %p214, %s215, %s216
      %p220 = pneg %p214
      %p221 = scmp.eq.s32.totalorder %s26, 3
      %p222 = por %p220, %p221
      %p223 = scmp.ne.s32.totalorder %s215, %s218
      %p224 = scmp.eq.s32.totalorder %s26, 0
      %p225 = por %p223, %p224
      %p226 = scmp.ne.s32.totalorder %s215, %s218
      %p227 = scmp.eq.s32.totalorder %s31, 3
      %p228 = por %p226, %p227
      %p229 = scmp.ne.s32.totalorder %s218, %s219
      %p230 = scmp.eq.s32.totalorder %s31, 0
      %p231 = por %p229, %p230
      %p232 = scmp.ne.s32.totalorder %s218, %s219
      %p233 = scmp.eq.s32.totalorder %s32, 3
      %p234 = por %p232, %p233
      %p236 = scmp.ne.s32.totalorder %s219, %s235
      %p237 = scmp.eq.s32.totalorder %s32, 0
      %p238 = por %p236, %p237
      %p239 = scmp.le.s32.totalorder 1, %s26
      %p240 = scmp.lt.s32.totalorder %s26, 5
      %p241 = pnand %p239, %p240
      %p242 = pneg %p241
      // Predicated region
      $region9: #{tpu_custom_call.1} parent=5 // pred_check
        _
      $region10: #{tpu_custom_call.1} parent=5 // pred_check_branch
        %244 = sbr.rel (%p241) target = $region12
      $region11: #{tpu_custom_call.1} parent=5 // pred_region
        %s245 = ssub.s32 %s26, 1
        // Predicated region
        $region13: #{tpu_custom_call.1} parent=11 // pred_check
          %p246 = pneg %p163
        $region14: #{tpu_custom_call.1} parent=11 // pred_check_branch
          %248 = sbr.rel (%p246) target = $region16
        $region15: #{tpu_custom_call.1} parent=11 // pred_region
          %s250 = ssub.s32 16, 16
          %251 = vsyncadd [#allocation9], %s250
          %s253 = sshll.u32 [#allocation10], 4
          %s254 = int_to_ptr.vmem [resolvable:$true] %s253
          %256 = dma.hbm_to_vmem [thread:$0]  %s4, 16, %s254, [#allocation9]
        $region16: #{tpu_custom_call.1} parent=11 // pred_fallthru
          _
        // Predicated region
        $region17: #{tpu_custom_call.1} parent=11 // pred_check
          %p257 = pneg %p184
        $region18: #{tpu_custom_call.1} parent=11 // pred_check_branch
          %259 = sbr.rel (%p257) target = $region20
        $region19: #{tpu_custom_call.1} parent=11 // pred_region
          %s261 = ssub.s32 128, 128
          %262 = vsyncadd [#allocation12], %s261
          %s264 = sshll.u32 [#allocation11], 4
          %s265 = int_to_ptr.vmem [resolvable:$true] %s264
          %267 = dma.hbm_to_vmem [thread:$0]  %s5, 128, %s265, [#allocation12]
        $region20: #{tpu_custom_call.1} parent=11 // pred_fallthru
          _
        // Predicated region
        $region21: #{tpu_custom_call.1} parent=11 // pred_check
          %p268 = pneg %p205
        $region22: #{tpu_custom_call.1} parent=11 // pred_check_branch
          %270 = sbr.rel (%p268) target = $region24
        $region23: #{tpu_custom_call.1} parent=11 // pred_region
          %s272 = ssub.s32 128, 128
          %273 = vsyncadd [#allocation12], %s272
          %s275 = sshll.u32 [#allocation13], 4
          %s276 = int_to_ptr.vmem [resolvable:$true] %s275
          %278 = dma.hbm_to_vmem [thread:$0]  %s6, 128, %s276, [#allocation12]
        $region24: #{tpu_custom_call.1} parent=11 // pred_fallthru
          _
      $region12: #{tpu_custom_call.1} parent=5 // pred_fallthru
        _
      %p279 = scmp.lt.s32.totalorder %s26, 4
      // Predicated region
      $region25: #{tpu_custom_call.1} parent=5 // pred_check
        %p280 = pneg %p279
      $region26: #{tpu_custom_call.1} parent=5 // pred_check_branch
        %282 = sbr.rel (%p280) target = $region28
      $region27: #{tpu_custom_call.1} parent=5 // pred_region
        // Predicated region
        $region29: #{tpu_custom_call.1} parent=27 // pred_check
          %p283 = pneg %p58
        $region30: #{tpu_custom_call.1} parent=27 // pred_check_branch
          %285 = sbr.rel (%p283) target = $region32
        $region31: #{tpu_custom_call.1} parent=27 // pred_region
          %s286 = sand.u32 %s48, 1
          %s287 = scalar_lea.sflag [#allocation3], %s286
          %s288 = sand.u32 %s48, 1
          %s289 = smul.addr %s288, 4
          %s290 = scalar_lea.vmem [#allocation2], %s289
          %s292 = ssub.s32 64, 64
          %293 = vsyncadd %s287, %s292
          %s294 = smul.addr %s33, 64
          %s295 = scalar_lea.hbm %s0, %s294
          %s297 = sshll.u32 %s290, 4
          %s298 = int_to_ptr.vmem [resolvable:$true] %s297
          %300 = dma.hbm_to_vmem [thread:$0]  %s295, 64, %s298, %s287
        $region32: #{tpu_custom_call.1} parent=27 // pred_fallthru
          _
        // Predicated region
        $region33: #{tpu_custom_call.1} parent=27 // pred_check
          %p301 = pneg %p84
        $region34: #{tpu_custom_call.1} parent=27 // pred_check_branch
          %303 = sbr.rel (%p301) target = $region36
        $region35: #{tpu_custom_call.1} parent=27 // pred_region
          %s304 = sand.u32 %s26, 1
          %s305 = scalar_lea.sflag [#allocation6], %s304
          %s306 = sand.u32 %s74, 1
          %s307 = smul.addr %s306, 16
          %s308 = scalar_lea.vmem [#allocation5], %s307
          %s310 = ssub.s32 256, 256
          %311 = vsyncadd %s305, %s310
          %s312 = smul.addr %s34, 64
          %s313 = scalar_lea.hbm %s1, %s312
          %s314 = sshll.u32 %s308, 4
          %s315 = int_to_ptr.vmem [resolvable:$true] %s314
          %320 = dma.hbm_to_vmem [thread:$0]  %s313, 256, %s315, %s305, 128, 64, 4
        $region36: #{tpu_custom_call.1} parent=27 // pred_fallthru
          _
        // Predicated region
        $region37: #{tpu_custom_call.1} parent=27 // pred_check
          %p321 = pneg %p110
        $region38: #{tpu_custom_call.1} parent=27 // pred_check_branch
          %323 = sbr.rel (%p321) target = $region40
        $region39: #{tpu_custom_call.1} parent=27 // pred_region
          %s324 = sand.u32 %s26, 1
          %s325 = scalar_lea.sflag [#allocation6], %s324
          %s326 = sand.u32 %s100, 1
          %s327 = scalar_lea.vmem [#allocation7], %s326
          %s329 = ssub.s32 16, 16
          %330 = vsyncadd %s325, %s329
          %s331 = smul.addr %s34, 16
          %s332 = scalar_lea.hbm %s2, %s331
          %s334 = sshll.u32 %s327, 4
          %s335 = int_to_ptr.vmem [resolvable:$true] %s334
          %337 = dma.hbm_to_vmem [thread:$0]  %s332, 16, %s335, %s325
        $region40: #{tpu_custom_call.1} parent=27 // pred_fallthru
          _
        // Predicated region
        $region41: #{tpu_custom_call.1} parent=27 // pred_check
          %p338 = pneg %p136
        $region42: #{tpu_custom_call.1} parent=27 // pred_check_branch
          %340 = sbr.rel (%p338) target = $region44
        $region43: #{tpu_custom_call.1} parent=27 // pred_region
          %s341 = sand.u32 %s26, 1
          %s342 = scalar_lea.sflag [#allocation9], %s341
          %s343 = sand.u32 %s126, 1
          %s344 = smul.addr %s343, 8
          %s345 = scalar_lea.vmem [#allocation8], %s344
          %s346 = smul.u32 2, %s34
          %s348 = ssub.s32 128, 128
          %349 = vsyncadd %s342, %s348
          %s350 = smul.addr %s346, 64
          %s351 = scalar_lea.hbm %s3, %s350
          %s352 = sshll.u32 %s345, 4
          %s353 = int_to_ptr.vmem [resolvable:$true] %s352
          %358 = dma.hbm_to_vmem [thread:$0]  %s351, 128, %s353, %s342, 64, 64, 4
        $region44: #{tpu_custom_call.1} parent=27 // pred_fallthru
          _
      $region28: #{tpu_custom_call.1} parent=5 // pred_fallthru
        _
      %p359 = scmp.le.s32.totalorder 1, %s26
      %p360 = scmp.lt.s32.totalorder %s26, 5
      %p361 = pnand %p359, %p360
      %p362 = pneg %p361
      // Predicated region
      $region45: #{tpu_custom_call.1} parent=5 // pred_check
        _
      $region46: #{tpu_custom_call.1} parent=5 // pred_check_branch
        %364 = sbr.rel (%p361) target = $region48
      $region47: #{tpu_custom_call.1} parent=5 // pred_region
        %s365 = ssub.s32 %s26, 1
        %s366 = sand.u32 %s51, 1
        %s367 = scalar_lea.sflag [#allocation3], %s366
        %s368 = sand.u32 %s51, 1
        %s369 = smul.addr %s368, 4
        %s370 = scalar_lea.vmem [#allocation2], %s369
        // Predicated region
        $region49: #{tpu_custom_call.1} parent=47 // pred_check
          %p371 = pneg %p64
        $region50: #{tpu_custom_call.1} parent=47 // pred_check_branch
          %373 = sbr.rel (%p371) target = $region52
        $region51: #{tpu_custom_call.1} parent=47 // pred_region
          %374 = dma.done %s367, 64
        $region52: #{tpu_custom_call.1} parent=47 // pred_fallthru
          _
        %s375 = sand.u32 %s31, 1
        %s376 = scalar_lea.sflag [#allocation6], %s375
        %s377 = sand.u32 %s77, 1
        %s378 = smul.addr %s377, 16
        %s379 = scalar_lea.vmem [#allocation5], %s378
        // Predicated region
        $region53: #{tpu_custom_call.1} parent=47 // pred_check
          %p380 = pneg %p90
        $region54: #{tpu_custom_call.1} parent=47 // pred_check_branch
          %382 = sbr.rel (%p380) target = $region56
        $region55: #{tpu_custom_call.1} parent=47 // pred_region
          %383 = dma.done %s376, 256
        $region56: #{tpu_custom_call.1} parent=47 // pred_fallthru
          _
        %s384 = sand.u32 %s31, 1
        %s385 = scalar_lea.sflag [#allocation6], %s384
        %s386 = sand.u32 %s103, 1
        %s387 = scalar_lea.vmem [#allocation7], %s386
        // Predicated region
        $region57: #{tpu_custom_call.1} parent=47 // pred_check
          %p388 = pneg %p116
        $region58: #{tpu_custom_call.1} parent=47 // pred_check_branch
          %390 = sbr.rel (%p388) target = $region60
        $region59: #{tpu_custom_call.1} parent=47 // pred_region
          %391 = dma.done %s385, 16
        $region60: #{tpu_custom_call.1} parent=47 // pred_fallthru
          _
        %s392 = sand.u32 %s31, 1
        %s393 = scalar_lea.sflag [#allocation9], %s392
        %s394 = sand.u32 %s129, 1
        %s395 = smul.addr %s394, 8
        %s396 = scalar_lea.vmem [#allocation8], %s395
        // Predicated region
        $region61: #{tpu_custom_call.1} parent=47 // pred_check
          %p397 = pneg %p142
        $region62: #{tpu_custom_call.1} parent=47 // pred_check_branch
          %399 = sbr.rel (%p397) target = $region64
        $region63: #{tpu_custom_call.1} parent=47 // pred_region
          %400 = dma.done %s393, 128
        $region64: #{tpu_custom_call.1} parent=47 // pred_fallthru
          _
        // Predicated region
        $region65: #{tpu_custom_call.1} parent=47 // pred_check
          %p401 = pneg %p163
        $region66: #{tpu_custom_call.1} parent=47 // pred_check_branch
          %403 = sbr.rel (%p401) target = $region68
        $region67: #{tpu_custom_call.1} parent=47 // pred_region
          %404 = dma.done [#allocation9], 16
        $region68: #{tpu_custom_call.1} parent=47 // pred_fallthru
          _
        // Predicated region
        $region69: #{tpu_custom_call.1} parent=47 // pred_check
          %p405 = pneg %p184
        $region70: #{tpu_custom_call.1} parent=47 // pred_check_branch
          %407 = sbr.rel (%p405) target = $region72
        $region71: #{tpu_custom_call.1} parent=47 // pred_region
          %408 = dma.done [#allocation12], 128
        $region72: #{tpu_custom_call.1} parent=47 // pred_fallthru
          _
        // Predicated region
        $region73: #{tpu_custom_call.1} parent=47 // pred_check
          %p409 = pneg %p205
        $region74: #{tpu_custom_call.1} parent=47 // pred_check_branch
          %411 = sbr.rel (%p409) target = $region76
        $region75: #{tpu_custom_call.1} parent=47 // pred_region
          %412 = dma.done [#allocation12], 128
        $region76: #{tpu_custom_call.1} parent=47 // pred_fallthru
          _
        %s413 = sand.u32 %s51, 1
        %s414 = scalar_lea.sflag [#allocation3], %s413
        %s415 = sand.u32 %s51, 1
        %s416 = smul.addr %s415, 4
        %s417 = scalar_lea.vmem [#allocation2], %s416
        %p418 = pneg %p64
        %p419 = pneg %p61
        %s420 = sand.u32 %s31, 1
        %s421 = scalar_lea.sflag [#allocation6], %s420
        %s422 = sand.u32 %s77, 1
        %s423 = smul.addr %s422, 16
        %s424 = scalar_lea.vmem [#allocation5], %s423
        %p425 = pneg %p90
        %p426 = pneg %p87
        %s427 = sand.u32 %s31, 1
        %s428 = scalar_lea.sflag [#allocation6], %s427
        %s429 = sand.u32 %s103, 1
        %s430 = scalar_lea.vmem [#allocation7], %s429
        %p431 = pneg %p116
        %p432 = pneg %p113
        %s433 = sand.u32 %s31, 1
        %s434 = scalar_lea.sflag [#allocation9], %s433
        %s435 = sand.u32 %s129, 1
        %s436 = smul.addr %s435, 8
        %s437 = scalar_lea.vmem [#allocation8], %s436
        %p438 = pneg %p142
        %p439 = pneg %p139
        %p440 = pneg %p163
        %p441 = pneg %p160
        %p442 = pneg %p184
        %p443 = pneg %p181
        %p444 = pneg %p205
        %p445 = pneg %p202
        %p446 = pneg %p231
        %p447 = pneg %p228
        %s448 = sand.u32 %s218, 1
        %s449 = scalar_lea.sflag [#allocation4], %s448
        %s450 = sand.u32 %s218, 1
        %s451 = smul.addr %s450, 8
        %s452 = scalar_lea.vmem [#allocation14], %s451
        %s453 = smul.u32 2, %s36
        %v455 = vld [vmem:[%s370] sm:$0xf]
        %v456 = vld [vmem:[%s379] sm:$0xf]
        %v457 = vld [vmem:[%s379 + $0x4] sm:$0xf]
        %v458 = vld [vmem:[%s379 + $0x8] sm:$0xf]
        %v459 = vld [vmem:[%s379 + $0xc] sm:$0xf]
        %v460 = vld [vmem:[%s387] sm:$0x1]
        %v462 = vlaneseq
        %v463 = vshrl.u32 %v462, 7
        %v464 = vsub.s32 0, %v463
        %v465 = vrot.slane %v460, %v464
        %v471 = vunpack.c.l.b16 %v456
        %v472 = vunpack.c.l.b16 %v457
        %v473 = vunpack.c.l.b16 %v458
        %v474 = vunpack.c.l.b16 %v459
        %v475 = vpack.c.b16 %v472, %v471
        %v476 = vpack.c.b16 %v474, %v473
        %vm479 = vcmask 261120
        %v481 = vsel %vm479, %v455, 0
        %483 = vmatprep.subr.bf16.mxu0 0
        %484 = vmatpush1.bf16.msra.mxu0 %v475
        %485 = vmatprep.subr.bf16.mxu0 0
        %486 = vmatpush1.bf16.msra.mxu0 %v476
        %487 = vmatprep.subr.bf16.mxu0 0
        %488 = vmatpush1.bf16.msra.mxu0 0
        %489 = vmatprep.subr.bf16.mxu0 0
        %490 = vmatpush1.bf16.msra.mxu0 0
        %491 = vmatprep.subr.bf16.mxu0 0
        %492 = vmatpush1.bf16.msra.mxu0 0
        %493 = vmatprep.subr.bf16.mxu0 0
        %494 = vmatpush1.bf16.msra.mxu0 0
        %495 = vmatprep.subr.bf16.mxu0 0
        %496 = vmatpush1.bf16.msra.mxu0 0
        %497 = vmatprep.subr.bf16.mxu0 0
        %498 = vmatpush1.bf16.msra.mxu0 0
        %499 = vmatprep.subr.bf16.mxu0 0
        %500 = vmatpush1.bf16.msra.mxu0 0
        %501 = vmatprep.subr.bf16.mxu0 0
        %502 = vmatpush1.bf16.msra.mxu0 0
        %503 = vmatprep.subr.bf16.mxu0 0
        %504 = vmatpush1.bf16.msra.mxu0 0
        %505 = vmatprep.subr.bf16.mxu0 0
        %506 = vmatpush1.bf16.msra.mxu0 0
        %507 = vmatprep.subr.bf16.mxu0 0
        %508 = vmatpush1.bf16.msra.mxu0 0
        %509 = vmatprep.subr.bf16.mxu0 0
        %510 = vmatpush1.bf16.msra.mxu0 0
        %511 = vmatprep.subr.bf16.mxu0 0
        %512 = vmatpush1.bf16.msra.mxu0 0
        %513 = vmatprep.subr.bf16.mxu0 0
        %514 = vmatpush1.bf16.msra.mxu0 0
        %515 = vmatprep.mubr.bf16.mxu0 0
        %516 = vmatmul.mubr.bf16.gmra.mrb[0].mxu0 %v481
        %v517 = vpop.f32.mrb[0].mxu0
        %v518 = vadd.f32 %v465, %v517
        %v519 = vpop.f32.mrb[0].mxu0
        %v520 = vpop.f32.mrb[0].mxu0
        %v521 = vpop.f32.mrb[0].mxu0
        %522 = vdwg.mxu0
        %v523 = vpack.c.bf16 %v518, %v518
        %v524 = vld [vmem:[#allocation11] sm:$0xff]
        %v525 = vld [vmem:[#allocation13] sm:$0xff]
        %527 = vrot.lane.b32.xlu0 %v524, 16
        %v528 = vpop.permute.xlu0 %527
        %v530 = vmul.f32 %v518, %v528
        %532 = vrot.lane.b32.xlu0 %v518, 108
        %v533 = vpop.permute.xlu0 %532
        %535 = vrot.lane.b32.xlu0 %v518, 116
        %v536 = vpop.permute.xlu0 %535
        %vm538 = vcmask 31744
        %v539 = vsel %vm538, %v533, %v536
        %v540 = vmul.f32 %v539, %v525
        %542 = vrot.lane.b32.xlu0 %v540, 16
        %v543 = vpop.permute.xlu0 %542
        %v545 = vadd.f32 %v530, %v543
        %v546 = vpack.c.bf16 %v545, %v545
        %v547 = vmul.f32 %v518, %v524
        %548 = vrot.lane.b32.xlu0 %v518, 124
        %v549 = vpop.permute.xlu0 %548
        %551 = vrot.lane.b32.xlu0 %v518, 4
        %v552 = vpop.permute.xlu0 %551
        %v554 = vsel %vm538, %v549, %v552
        %v555 = vmul.f32 %v554, %v525
        %v556 = vadd.f32 %v547, %v555
        %557 = vrot.lane.b32.xlu0 %v524, 8
        %v558 = vpop.permute.xlu0 %557
        %v560 = vmul.f32 %v518, %v558
        %v561 = vsel %vm538, %v536, %v549
        %v562 = vmul.f32 %v561, %v525
        %564 = vrot.lane.b32.xlu0 %v562, 8
        %v565 = vpop.permute.xlu0 %564
        %v567 = vadd.f32 %v560, %v565
        %569 = vrot.lane.b32.xlu0 %v567, 120
        %v570 = vpop.permute.xlu0 %569
        %v572 = vpack.c.bf16 %v570, %v556
        %574 = vrot.lane.b32.xlu0 %v546, 112
        %v575 = vpop.permute.xlu0 %574
        %vm576 = vcmask 64512
        %v578 = vsel %vm576, %v572, 0
        %v581 = vsel %vm576, %v575, 0
        %583 = vmatprep.subr.bf16.mxu0 0
        %584 = vmatpush1.bf16.xpose.msra.mxu0 %v581
        %585 = vmatprep.subr.bf16.mxu0 0
        %586 = vmatpush1.bf16.xpose.msra.mxu0 0
        %587 = vmatprep.subr.bf16.mxu0 0
        %588 = vmatpush1.bf16.xpose.msra.mxu0 0
        %589 = vmatprep.subr.bf16.mxu0 0
        %590 = vmatpush1.bf16.xpose.msra.mxu0 0
        %591 = vmatprep.subr.bf16.mxu0 0
        %592 = vmatpush1.bf16.xpose.msra.mxu0 0
        %593 = vmatprep.subr.bf16.mxu0 0
        %594 = vmatpush1.bf16.xpose.msra.mxu0 0
        %595 = vmatprep.subr.bf16.mxu0 0
        %596 = vmatpush1.bf16.xpose.msra.mxu0 0
        %597 = vmatprep.subr.bf16.mxu0 0
        %598 = vmatpush1.bf16.xpose.msra.mxu0 0
        %599 = vmatprep.subr.bf16.mxu0 0
        %600 = vmatpush1.bf16.xpose.msra.mxu0 0
        %601 = vmatprep.subr.bf16.mxu0 0
        %602 = vmatpush1.bf16.xpose.msra.mxu0 0
        %603 = vmatprep.subr.bf16.mxu0 0
        %604 = vmatpush1.bf16.xpose.msra.mxu0 0
        %605 = vmatprep.subr.bf16.mxu0 0
        %606 = vmatpush1.bf16.xpose.msra.mxu0 0
        %607 = vmatprep.subr.bf16.mxu0 0
        %608 = vmatpush1.bf16.xpose.msra.mxu0 0
        %609 = vmatprep.subr.bf16.mxu0 0
        %610 = vmatpush1.bf16.xpose.msra.mxu0 0
        %611 = vmatprep.subr.bf16.mxu0 0
        %612 = vmatpush1.bf16.xpose.msra.mxu0 0
        %613 = vmatprep.subr.bf16.mxu0 0
        %614 = vmatpush1.bf16.xpose.msra.mxu0 0
        %615 = vmatprep.mubr.bf16.mxu0 0
        %616 = vmatmul.mubr.bf16.gmra.mrb[0].mxu0 %v578
        %v617 = vpop.f32.mrb[0].mxu0
        %v618 = vadd.f32 0.0, %v617
        %v619 = vpop.f32.mrb[0].mxu0
        %v620 = vpop.f32.mrb[0].mxu0
        %v621 = vadd.f32 0.0, %v620
        %v622 = vpop.f32.mrb[0].mxu0
        %623 = vdwg.mxu0
        %v624 = vsel %vm576, %v618, -inf
        %625 = vmax.xlane.f32.xlu0 %v624
        %v626 = vpop.xlane.xlu0 %625
        %v627 = vsel %vm576, %v621, -inf
        %628 = vmax.xlane.f32.xlu0 %v627
        %v629 = vpop.xlane.xlu0 %628
        %v630 = vsub.f32 %v618, %v626
        %v631 = vsub.f32 %v621, %v629
        %v632 = vmul.f32 %v630, 1.442695
        %v633 = vpow.pop %v632
        %v634 = vmul.f32 %v631, 1.442695
        %v635 = vpow.pop %v634
        %v636 = vsel %vm576, %v633, 0.0
        %637 = vadd.xlane.f32.xlu0 %v636
        %v638 = vpop.xlane.xlu0 %637
        %v639 = vsel %vm576, %v635, 0.0
        %640 = vadd.xlane.f32.xlu0 %v639
        %v641 = vpop.xlane.xlu0 %640
        %v642 = vpack.c.bf16 %v635, %v633
        %644 = vrot.lane.b32.xlu0 %v523, 104
        %v645 = vpop.permute.xlu0 %644
        %v647 = vsel %vm576, %v642, 0
        %vm649 = vcmask 1043456
        %v651 = vsel %vm649, %v645, 0
        %653 = vmatprep.subr.bf16.mxu0 0
        %654 = vmatpush1.bf16.msra.mxu0 %v651
        %655 = vmatprep.subr.bf16.mxu0 0
        %656 = vmatpush1.bf16.msra.mxu0 0
        %657 = vmatprep.subr.bf16.mxu0 0
        %658 = vmatpush1.bf16.msra.mxu0 0
        %659 = vmatprep.subr.bf16.mxu0 0
        %660 = vmatpush1.bf16.msra.mxu0 0
        %661 = vmatprep.subr.bf16.mxu0 0
        %662 = vmatpush1.bf16.msra.mxu0 0
        %663 = vmatprep.subr.bf16.mxu0 0
        %664 = vmatpush1.bf16.msra.mxu0 0
        %665 = vmatprep.subr.bf16.mxu0 0
        %666 = vmatpush1.bf16.msra.mxu0 0
        %667 = vmatprep.subr.bf16.mxu0 0
        %668 = vmatpush1.bf16.msra.mxu0 0
        %669 = vmatprep.subr.bf16.mxu0 0
        %670 = vmatpush1.bf16.msra.mxu0 0
        %671 = vmatprep.subr.bf16.mxu0 0
        %672 = vmatpush1.bf16.msra.mxu0 0
        %673 = vmatprep.subr.bf16.mxu0 0
        %674 = vmatpush1.bf16.msra.mxu0 0
        %675 = vmatprep.subr.bf16.mxu0 0
        %676 = vmatpush1.bf16.msra.mxu0 0
        %677 = vmatprep.subr.bf16.mxu0 0
        %678 = vmatpush1.bf16.msra.mxu0 0
        %679 = vmatprep.subr.bf16.mxu0 0
        %680 = vmatpush1.bf16.msra.mxu0 0
        %681 = vmatprep.subr.bf16.mxu0 0
        %682 = vmatpush1.bf16.msra.mxu0 0
        %683 = vmatprep.subr.bf16.mxu0 0
        %684 = vmatpush1.bf16.msra.mxu0 0
        %685 = vmatprep.mubr.bf16.mxu0 0
        %686 = vmatmul.mubr.bf16.gmra.mrb[0].mxu0 %v647
        %v687 = vpop.f32.mrb[0].mxu0
        %v688 = vadd.f32 0.0, %v687
        %v689 = vpop.f32.mrb[0].mxu0
        %v690 = vpop.f32.mrb[0].mxu0
        %v691 = vadd.f32 0.0, %v690
        %v692 = vpop.f32.mrb[0].mxu0
        %693 = vdwg.mxu0
        %v694 = vrcp.pop %v638
        %v695 = vrcp.pop %v641
        %v696 = vmul.f32 %v688, %v694
        %v697 = vmul.f32 %v691, %v695
        %699 = vrot.lane.b32.xlu0 %v697, 8
        %v700 = vpop.permute.xlu0 %699
        %v702 = vsel %vm576, %v696, %v700
        %v703 = vpack.c.bf16 %v702, %v702
        %v704 = vld [vmem:[%s396] sm:$0xf]
        %v705 = vld [vmem:[%s396 + $0x4] sm:$0xf]
        %v708 = vunpack.c.l.b16 %v704
        %v709 = vunpack.c.l.b16 %v705
        %v710 = vpack.c.b16 %v709, %v708
        %vm712 = vcmask 130048
        %v714 = vsel %vm712, %v703, 0
        %716 = vmatprep.subr.bf16.mxu0 0
        %717 = vmatpush1.bf16.msra.mxu0 %v710
        %718 = vmatprep.subr.bf16.mxu0 0
        %719 = vmatpush1.bf16.msra.mxu0 0
        %720 = vmatprep.subr.bf16.mxu0 0
        %721 = vmatpush1.bf16.msra.mxu0 0
        %722 = vmatprep.subr.bf16.mxu0 0
        %723 = vmatpush1.bf16.msra.mxu0 0
        %724 = vmatprep.subr.bf16.mxu0 0
        %725 = vmatpush1.bf16.msra.mxu0 0
        %726 = vmatprep.subr.bf16.mxu0 0
        %727 = vmatpush1.bf16.msra.mxu0 0
        %728 = vmatprep.subr.bf16.mxu0 0
        %729 = vmatpush1.bf16.msra.mxu0 0
        %730 = vmatprep.subr.bf16.mxu0 0
        %731 = vmatpush1.bf16.msra.mxu0 0
        %732 = vmatprep.subr.bf16.mxu0 0
        %733 = vmatpush1.bf16.msra.mxu0 0
        %734 = vmatprep.subr.bf16.mxu0 0
        %735 = vmatpush1.bf16.msra.mxu0 0
        %736 = vmatprep.subr.bf16.mxu0 0
        %737 = vmatpush1.bf16.msra.mxu0 0
        %738 = vmatprep.subr.bf16.mxu0 0
        %739 = vmatpush1.bf16.msra.mxu0 0
        %740 = vmatprep.subr.bf16.mxu0 0
        %741 = vmatpush1.bf16.msra.mxu0 0
        %742 = vmatprep.subr.bf16.mxu0 0
        %743 = vmatpush1.bf16.msra.mxu0 0
        %744 = vmatprep.subr.bf16.mxu0 0
        %745 = vmatpush1.bf16.msra.mxu0 0
        %746 = vmatprep.subr.bf16.mxu0 0
        %747 = vmatpush1.bf16.msra.mxu0 0
        %748 = vmatprep.mubr.bf16.mxu0 0
        %749 = vmatmul.mubr.bf16.gmra.mrb[0].mxu0 %v714
        %v750 = vpop.f32.mrb[0].mxu0
        %v751 = vadd.f32 0.0, %v750
        %v752 = vpop.f32.mrb[0].mxu0
        %v753 = vpop.f32.mrb[0].mxu0
        %v754 = vpop.f32.mrb[0].mxu0
        %755 = vdwg.mxu0
        %p756 = scmp.eq.s32.totalorder %s36, 0
        // Predicated region
        $region77: #{tpu_custom_call.1} parent=47 // pred_check
          %p757 = pneg %p756
        $region78: #{tpu_custom_call.1} parent=47 // pred_check_branch
          %759 = sbr.rel (%p757) target = $region80
        $region79: #{tpu_custom_call.1} parent=47 // pred_region
          %v760 = vld [vmem:[#allocation10] sm:$0x1]
          %v762 = vlaneseq
          %v763 = vshrl.u32 %v762, 7
          %v764 = vsub.s32 0, %v763
          %v765 = vrot.slane %v760, %v764
          %v767 = vadd.f32 %v765, %v751
          %768 = vst.msk [vmem:[%s452] sm:$0xff] %vm479, %v767
        $region80: #{tpu_custom_call.1} parent=47 // pred_fallthru
          _
        %p769 = scmp.ne.s32.totalorder %s36, 0
        // Predicated region
        $region81: #{tpu_custom_call.1} parent=47 // pred_check
          %p770 = pneg %p769
        $region82: #{tpu_custom_call.1} parent=47 // pred_check_branch
          %772 = sbr.rel (%p770) target = $region84
        $region83: #{tpu_custom_call.1} parent=47 // pred_region
          %v773 = vld [vmem:[%s452] sm:$0xff]
          %v774 = vadd.f32 %v773, %v751
          %775 = vst.msk [vmem:[%s452] sm:$0xff] %vm479, %v774
        $region84: #{tpu_custom_call.1} parent=47 // pred_fallthru
          _
        %s776 = sand.u32 %s218, 1
        %s777 = scalar_lea.sflag [#allocation4], %s776
        %s778 = sand.u32 %s218, 1
        %s779 = smul.addr %s778, 8
        %s780 = scalar_lea.vmem [#allocation14], %s779
        // Predicated region
        $region85: #{tpu_custom_call.1} parent=47 // pred_check
          %p781 = pneg %p228
        $region86: #{tpu_custom_call.1} parent=47 // pred_check_branch
          %783 = sbr.rel (%p781) target = $region88
        $region87: #{tpu_custom_call.1} parent=47 // pred_region
          %s785 = ssub.s32 128, 128
          %786 = vsyncadd %s777, %s785
          %s787 = smul.addr %s35, 128
          %s788 = scalar_lea.hbm %s7, %s787
          %s790 = sshll.u32 %s780, 4
          %s791 = int_to_ptr.vmem [resolvable:$true] %s790
          %793 = dma.vmem_to_hbm [thread:$0]  %s791, 128, %s788, %s777
        $region88: #{tpu_custom_call.1} parent=47 // pred_fallthru
          _
      $region48: #{tpu_custom_call.1} parent=5 // pred_fallthru
        _
      %p794 = scmp.le.s32.totalorder 2, %s26
      // Predicated region
      $region89: #{tpu_custom_call.1} parent=5 // pred_check
        %p795 = pneg %p794
      $region90: #{tpu_custom_call.1} parent=5 // pred_check_branch
        %797 = sbr.rel (%p795) target = $region92
      $region91: #{tpu_custom_call.1} parent=5 // pred_region
        %s798 = ssub.s32 %s26, 2
        // Predicated region
        $region93: #{tpu_custom_call.1} parent=91 // pred_check
          %p799 = pneg %p234
        $region94: #{tpu_custom_call.1} parent=91 // pred_check_branch
          %801 = sbr.rel (%p799) target = $region96
        $region95: #{tpu_custom_call.1} parent=91 // pred_region
          %s802 = sand.u32 %s219, 1
          %s803 = scalar_lea.sflag [#allocation4], %s802
          %s804 = sand.u32 %s219, 1
          %s805 = smul.addr %s804, 8
          %s806 = scalar_lea.vmem [#allocation14], %s805
          %807 = dma.done %s803, 128
        $region96: #{tpu_custom_call.1} parent=91 // pred_fallthru
          _
      $region92: #{tpu_custom_call.1} parent=5 // pred_fallthru
        _
    $region6: #{tpu_custom_call.1} parent=1 // loop_footer
      %s30 = sadd.s32 1, %s26
    $region7: #{tpu_custom_call.1} parent=1 // loop_footer_branch
      %25 = sbr.rel target = $region3
    $region8: #{tpu_custom_call.1} parent=1 // loop_exit
      _
    %808 = vsyncpa [#allocation3], 1
    %s809 = scalar_lea.sflag [#allocation3], 1
    %810 = vsyncpa %s809, 1
    %811 = vsyncpa [#allocation6], 1
    %s812 = scalar_lea.sflag [#allocation6], 1
    %813 = vsyncpa %s812, 1
    %814 = vsyncpa [#allocation9], 1
    %s815 = scalar_lea.sflag [#allocation9], 1
    %816 = vsyncpa %s815, 1
    %817 = vsyncpa [#allocation12], 1
    %818 = vsyncpa [#allocation4], 1
    %s819 = scalar_lea.sflag [#allocation4], 1
    %820 = vsyncpa %s819, 1

</llo_original>
